<compile_context>
chip_gen: v7x
topology: tpu7x:2x2x1
jax: 0.10.0
libtpu: 0.0.40
codegen_flags: <defaults>
</compile_context>

<pallas_src>
import functools

import jax
import jax.numpy as jnp
from jax import lax
from jax.experimental import pallas as pl
from jax.experimental.pallas import tpu as pltpu


def _round_up(x, m):
    return ((x + m - 1) // m) * m


def _pick_row_tile(B, C, in_bytes_per_row):
    """Largest batch tile keeping double-buffered inputs + f32 intermediates
    inside a conservative VMEM budget (safe on v5e / v6e / v7x)."""
    # per tile row: 2 pipeline buffers per input + ~8 full-width f32 temporaries
    per_row = 2 * in_bytes_per_row + 8 * C * 4
    budget = 24 << 20
    rows = max(8, budget // per_row)
    rows = min(rows, 1024, _round_up(B, 8))
    return max(8, (rows // 8) * 8)


def _make_kernel(underconfidence: bool, row_tile: int, total_rows: int):
    def kernel(pred_ref, tgt_ref, out_ref):
        row_start = pl.program_id(0) * row_tile

        logits = pred_ref[...].astype(jnp.float32)                   # (TB, C)
        targets = tgt_ref[...].astype(jnp.float32)                   # (TB, C)

        # numerically stable log-softmax over the class (lane) axis
        m = jnp.max(logits, axis=-1, keepdims=True)
        shifted = logits - m
        e = jnp.exp(shifted)
        s = jnp.sum(e, axis=-1, keepdims=True)
        logsoft = shifted - jnp.log(s)

        term = -jnp.sum(targets * logsoft, axis=-1, keepdims=True)   # (TB, 1)

        if underconfidence:
            # Reuse exp(shifted) instead of a second full-tile exp(logsoft) pass;
            # only (TB, 1) reciprocals go through the EUP.
            softmax = e * pl.reciprocal(s)
            ent = jnp.sum(-softmax * logsoft, axis=-1, keepdims=True)
            term = term + 2.0 * ent

        # Mask rows past the end of the batch (last tile may be partial).
        row_ids = row_start + lax.broadcasted_iota(jnp.int32, term.shape, 0)
        term = jnp.where(row_ids < total_rows, term, 0.0)

        out_ref[0, 0] = jnp.sum(term)

    return kernel


@functools.partial(jax.jit, static_argnames=("underconfidence", "dim", "row_tile"))
def cross_entropy_soft_labels(predictions, soft_targets, underconfidence=False,
                              dim=None, row_tile=None):
    B, C = predictions.shape
    assert soft_targets.shape == (B, C)
    assert dim in (None, 1, -1), "only class-axis softmax (dim=None/1/-1) supported"

    in_bytes_per_row = C * (predictions.dtype.itemsize + soft_targets.dtype.itemsize)
    if row_tile is None:
        row_tile = _pick_row_tile(B, C, in_bytes_per_row)
    assert row_tile % 8 == 0

    num_tiles = pl.cdiv(B, row_tile)

    # Explicit VMEM budget: double-buffered inputs + full-tile f32 intermediates
    # plus slack, capped well below v7x's 64 MiB physical VMEM.
    # TODO(synk): for vocabulary-sized C (tens of thousands+), tile the class axis
    # too with an online logsumexp instead of a full (row_tile, C) slab per step.
    need = row_tile * (2 * in_bytes_per_row + 8 * C * 4)
    vmem_limit = int(max(16 << 20, min(40 << 20, need + (8 << 20))))

    kernel = _make_kernel(bool(underconfidence), int(row_tile), int(B))

    partials = pl.pallas_call(
        kernel,
        out_shape=jax.ShapeDtypeStruct((num_tiles, 1), jnp.float32),
        grid_spec=pltpu.PrefetchScalarGridSpec(
            num_scalar_prefetch=0,
            grid=(num_tiles,),
            in_specs=[
                pl.BlockSpec((row_tile, C), lambda i: (i, 0)),
                pl.BlockSpec((row_tile, C), lambda i: (i, 0)),
            ],
            # One scalar partial per tile -> no cross-step accumulator state, so
            # the row axis is safely "parallel" (v7x megacore splits it across TCs).
            out_specs=pl.BlockSpec((1, 1), lambda i: (i, 0),
                                   memory_space=pltpu.SMEM),
        ),
        compiler_params=pltpu.CompilerParams(
            dimension_semantics=("parallel",),
            vmem_limit_bytes=vmem_limit),
    )(predictions, soft_targets)

    total = jnp.sum(partials)          # tree-reduce of per-tile f32 partials
    if dim is None:
        return total                   # torch.sum(x, None); outer mean is identity
    return total / jnp.float32(B)      # dim=1/-1: mean over the batch


def _reference(predictions, soft_targets, underconfidence=False, dim=None):
    logits = predictions.astype(jnp.float32)
    tgt = soft_targets.astype(jnp.float32)
    logsoft = jax.nn.log_softmax(logits, axis=-1)
    if dim is None:
        loss = -jnp.sum(tgt * logsoft)
        if underconfidence:
            sm = jax.nn.softmax(logits, axis=-1)
            loss = loss + 2.0 * jnp.sum(-sm * logsoft)
        return loss
    loss = -jnp.mean(jnp.sum(tgt * logsoft, axis=-1))
    if underconfidence:
        sm = jax.nn.softmax(logits, axis=-1)
        loss = loss + 2.0 * jnp.mean(jnp.sum(-sm * logsoft, axis=-1))
    return loss


if __name__ == "__main__":
    key = jax.random.PRNGKey(0)
    k1, k2, k3, k4 = jax.random.split(key, 4)

    # case 1: f32, nicely shaped batch
    B, C = 16, 128
    preds = jax.random.normal(k1, (B, C), dtype=jnp.float32)
    tgts = jax.nn.softmax(jax.random.normal(k2, (B, C), dtype=jnp.float32), axis=-1)
    for uc in (False, True):
        for dim in (None, 1):
            got = cross_entropy_soft_labels(preds, tgts, underconfidence=uc, dim=dim)
            jax.block_until_ready(got)
            want = _reference(preds, tgts, underconfidence=uc, dim=dim)
            assert jnp.allclose(got, want, rtol=1e-5, atol=1e-5), (uc, dim, got, want)

    # case 2: ragged batch (B not a multiple of the row tile) exercises masking
    B2, C2 = 13, 128
    preds2 = jax.random.normal(k3, (B2, C2), dtype=jnp.float32)
    tgts2 = jax.nn.softmax(jax.random.normal(k4, (B2, C2), dtype=jnp.float32), axis=-1)
    got = cross_entropy_soft_labels(preds2, tgts2, underconfidence=True, dim=1)
    jax.block_until_ready(got)
    want = _reference(preds2, tgts2, underconfidence=True, dim=1)
    assert jnp.allclose(got, want, rtol=1e-5, atol=1e-5), (got, want)

    # case 3: bf16 inputs pass straight through (half the HBM bytes), f32 math inside
    preds_bf = preds.astype(jnp.bfloat16)
    tgts_bf = tgts.astype(jnp.bfloat16)
    got = cross_entropy_soft_labels(preds_bf, tgts_bf, underconfidence=True, dim=1)
    jax.block_until_ready(got)
    want = _reference(preds_bf, tgts_bf, underconfidence=True, dim=1)
    assert jnp.allclose(got, want, rtol=1e-3, atol=1e-3), (got, want)

    print("KERNEL_OK")
</pallas_src>

<mosaic_0001>
module attributes {stable_mosaic.version = 11 : i64} {
  func.func @kernel(%arg0: i32, %arg1: memref<16x128xf32, #tpu.memory_space<vmem>>, %arg2: memref<16x128xf32, #tpu.memory_space<vmem>>, %arg3: memref<1x1xf32, #tpu.memory_space<smem>>) attributes {dimension_semantics = [#tpu.dimension_semantics<parallel>], iteration_bounds = array<i64: 1>, scalar_prefetch = 0 : i64, scratch_operands = 0 : i64, tpu.core_type = #tpu.core_type<tc>, window_params = [{transform_indices = @transform_0, window_bounds = array<i64: 16, 128>}, {transform_indices = @transform_1, window_bounds = array<i64: 16, 128>}, {transform_indices = @transform_2, window_bounds = array<i64: 1, 1>}]} {
    %c16_i32 = arith.constant 16 : i32
    %0 = arith.muli %arg0, %c16_i32 : i32
    %c0 = arith.constant 0 : index
    %c0_0 = arith.constant 0 : index
    %1 = vector.load %arg1[%c0, %c0_0] : memref<16x128xf32, #tpu.memory_space<vmem>>, vector<16x128xf32>
    %c0_1 = arith.constant 0 : index
    %c0_2 = arith.constant 0 : index
    %2 = vector.load %arg2[%c0_1, %c0_2] : memref<16x128xf32, #tpu.memory_space<vmem>>, vector<16x128xf32>
    %cst = arith.constant dense<0xFF800000> : vector<16xf32>
    %3 = vector.multi_reduction <maximumf>, %1, %cst [1] : vector<16x128xf32> to vector<16xf32>
    %4 = vector.shape_cast %3 : vector<16xf32> to vector<16x1xf32>
    %5 = vector.broadcast %4 : vector<16x1xf32> to vector<16x128xf32>
    %6 = arith.subf %1, %5 : vector<16x128xf32>
    %7 = math.exp %6 : vector<16x128xf32>
    %cst_3 = arith.constant dense<0.000000e+00> : vector<16xf32>
    %8 = vector.multi_reduction <add>, %7, %cst_3 [1] : vector<16x128xf32> to vector<16xf32>
    %9 = vector.shape_cast %8 : vector<16xf32> to vector<16x1xf32>
    %10 = math.log %9 : vector<16x1xf32>
    %11 = vector.broadcast %10 : vector<16x1xf32> to vector<16x128xf32>
    %12 = arith.subf %6, %11 : vector<16x128xf32>
    %13 = arith.mulf %2, %12 : vector<16x128xf32>
    %cst_4 = arith.constant dense<0.000000e+00> : vector<16xf32>
    %14 = vector.multi_reduction <add>, %13, %cst_4 [1] : vector<16x128xf32> to vector<16xf32>
    %15 = vector.shape_cast %14 : vector<16xf32> to vector<16x1xf32>
    %cst_5 = arith.constant 0.000000e+00 : f32
    %16 = vector.broadcast %cst_5 : f32 to vector<16x1xf32>
    %17 = arith.subf %16, %15 : vector<16x1xf32>
    %18 = tpu.iota {dimensions = array<i32: 0>} : vector<16x1xi32>
    %19 = vector.broadcast %0 : i32 to vector<16x1xi32>
    %20 = arith.addi %19, %18 : vector<16x1xi32>
    %c16_i32_6 = arith.constant 16 : i32
    %21 = vector.broadcast %c16_i32_6 : i32 to vector<16x1xi32>
    %22 = arith.cmpi slt, %20, %21 : vector<16x1xi32>
    %cst_7 = arith.constant 0.000000e+00 : f32
    %23 = vector.broadcast %cst_7 : f32 to vector<16x1xf32>
    %24 = arith.select %22, %17, %23 : vector<16x1xi1>, vector<16x1xf32>
    %25 = vector.shape_cast %24 : vector<16x1xf32> to vector<1x16x1xf32>
    %cst_8 = arith.constant dense<0.000000e+00> : vector<1xf32>
    %26 = vector.multi_reduction <add>, %25, %cst_8 [1, 2] : vector<1x16x1xf32> to vector<1xf32>
    %27 = vector.shape_cast %26 : vector<1xf32> to vector<1x1x1xf32>
    %28 = vector.extract %27[0, 0, 0] : f32 from vector<1x1x1xf32>
    %c0_9 = arith.constant 0 : index
    %c0_10 = arith.constant 0 : index
    %29 = memref.load %arg3[%c0_9, %c0_10] : memref<1x1xf32, #tpu.memory_space<smem>>
    memref.store %28, %arg3[%c0_9, %c0_10] : memref<1x1xf32, #tpu.memory_space<smem>>
    return
  }
  func.func @transform_0(%arg0: i32) -> (i32, i32) {
    %c0_i32 = arith.constant 0 : i32
    %c0_i32_0 = arith.constant 0 : i32
    return %arg0, %c0_i32 : i32, i32
  }
  func.func @transform_1(%arg0: i32) -> (i32, i32) {
    %c0_i32 = arith.constant 0 : i32
    %c0_i32_0 = arith.constant 0 : i32
    return %arg0, %c0_i32 : i32, i32
  }
  func.func @transform_2(%arg0: i32) -> (i32, i32) {
    %c0_i32 = arith.constant 0 : i32
    %c0_i32_0 = arith.constant 0 : i32
    return %arg0, %c0_i32 : i32, i32
  }
}

</mosaic_0001>

<llo_original>
// kernel: cross_entropy_soft_labels.1
$region0: #{cross_entropy_soft_labels.1}
  #allocation0 [shape = 'u32[]', space=smem, size = 0x4, offset = 0x4, fixed_abs, tag = 'smem constant byte address 0x4 - core index']
  #allocation1 [shape = 'u32[144,128]{1,0:T(1,128)}', space=vmem, size = 0x12000, scoped, tag = 'internal scratch']
  %s0 = inlined_call_operand.hbm [shape: f32[16,128], index: 0, kind: input, shape index: {}]
  %s1 = inlined_call_operand.hbm [shape: f32[16,128], index: 1, kind: input, shape index: {}]
  %s2 = inlined_call_operand.hbm [shape: f32[1,1], index: 2, kind: output, shape index: {}]
  %s3 = sld [smem:[#allocation0]]
  $region26: #{cross_entropy_soft_labels.1} parent=0
    _
  %s5 = ssub.s32 1, %s3
  %s6 = scalar_select 0, %s5, %s3
  $region1: #{cross_entropy_soft_labels.1} parent=0
    #allocation2 [shape = 'u8[8192]{0}', space=vmem, size = 0x2000, scoped, tag = 'input window, operand 0, single buffered']
    #allocation3 [shape = 's32[1]{0}', space=sflag, size = 0x4, scoped, tag = 'scoped memory for cross_entropy_soft_labels.1']
    #allocation4 [shape = 's32[1]{0}', space=sflag, size = 0x4, scoped, tag = 'scoped memory for cross_entropy_soft_labels.1']
    #allocation5 [shape = 'u8[8192]{0}', space=vmem, size = 0x2000, scoped, tag = 'input window, operand 1, single buffered']
    #allocation6 [shape = 's32[1]{0}', space=sflag, size = 0x4, scoped, tag = 'scoped memory for cross_entropy_soft_labels.1']
    #allocation7 [shape = 'u8[512]{0}', space=smem, size = 0x200, scoped, tag = 'output window, operand 0, single buffered']
    %7 = vsyncpa [#allocation3], 0
    %8 = vsyncpa [#allocation6], 0
    %9 = vsyncpa [#allocation4], 0
    // Predicated region
    $region2: #{cross_entropy_soft_labels.1} parent=1 // pred_check
      _
    $region3: #{cross_entropy_soft_labels.1} parent=1 // pred_check_branch
      %11 = sbr.rel (0) target = $region5
    $region4: #{cross_entropy_soft_labels.1} parent=1 // pred_region
      %s13 = ssub.s32 256, 256
      %14 = vsyncadd [#allocation3], %s13
      %s15 = sshll.u32 [#allocation2], 4
      %s16 = int_to_ptr.vmem [resolvable:$true] %s15
      %21 = dma.hbm_to_vmem [thread:$0]  %s0, 256, %s16, [#allocation3], 128, 128, 8
    $region5: #{cross_entropy_soft_labels.1} parent=1 // pred_fallthru
      _
    // Predicated region
    $region6: #{cross_entropy_soft_labels.1} parent=1 // pred_check
      _
    $region7: #{cross_entropy_soft_labels.1} parent=1 // pred_check_branch
      %23 = sbr.rel (0) target = $region9
    $region8: #{cross_entropy_soft_labels.1} parent=1 // pred_region
      %s25 = ssub.s32 256, 256
      %26 = vsyncadd [#allocation6], %s25
      %s27 = sshll.u32 [#allocation5], 4
      %s28 = int_to_ptr.vmem [resolvable:$true] %s27
      %33 = dma.hbm_to_vmem [thread:$0]  %s1, 256, %s28, [#allocation6], 128, 128, 8
    $region9: #{cross_entropy_soft_labels.1} parent=1 // pred_fallthru
      _
    // Predicated region
    $region10: #{cross_entropy_soft_labels.1} parent=1 // pred_check
      _
    $region11: #{cross_entropy_soft_labels.1} parent=1 // pred_check_branch
      %35 = sbr.rel (0) target = $region13
    $region12: #{cross_entropy_soft_labels.1} parent=1 // pred_region
      %36 = dma.done [#allocation3], 256
    $region13: #{cross_entropy_soft_labels.1} parent=1 // pred_fallthru
      _
    // Predicated region
    $region14: #{cross_entropy_soft_labels.1} parent=1 // pred_check
      _
    $region15: #{cross_entropy_soft_labels.1} parent=1 // pred_check_branch
      %38 = sbr.rel (0) target = $region17
    $region16: #{cross_entropy_soft_labels.1} parent=1 // pred_region
      %39 = dma.done [#allocation6], 256
    $region17: #{cross_entropy_soft_labels.1} parent=1 // pred_fallthru
      _
    %s40 = smul.u32 0, 16
    %v41 = vld [vmem:[#allocation2] sm:$0xff]
    %v42 = vld [vmem:[#allocation2 + $0x8] sm:$0xff]
    %v43 = vld [vmem:[#allocation5] sm:$0xff]
    %v44 = vld [vmem:[#allocation5 + $0x8] sm:$0xff]
    %45 = vmax.xlane.f32.xlu0 %v41
    %v46 = vpop.xlane.xlu0 %45
    %47 = vmax.xlane.f32.xlu0 %v42
    %v48 = vpop.xlane.xlu0 %47
    %v49 = vsub.f32 %v41, %v46
    %v50 = vsub.f32 %v42, %v48
    %v51 = vmul.f32 %v49, 1.442695
    %v52 = vpow.pop %v51
    %v53 = vmul.f32 %v50, 1.442695
    %v54 = vpow.pop %v53
    %55 = vadd.xlane.f32.xlu0 %v52
    %v56 = vpop.xlane.xlu0 %55
    %57 = vadd.xlane.f32.xlu0 %v54
    %v58 = vpop.xlane.xlu0 %57
    %v59 = vlog2.pop %v56
    %v60 = vmul.f32 %v59, 0.6931472
    %v61 = vlog2.pop %v58
    %v62 = vmul.f32 %v61, 0.6931472
    %v63 = vsub.f32 %v49, %v60
    %v64 = vsub.f32 %v50, %v62
    %v65 = vmul.f32 %v43, %v63
    %v66 = vmul.f32 %v44, %v64
    %67 = vadd.xlane.f32.xlu0 %v65
    %v68 = vpop.xlane.xlu0 %67
    %69 = vadd.xlane.f32.xlu0 %v66
    %v70 = vpop.xlane.xlu0 %69
    %v71 = vsub.f32 0.0, %v68
    %v72 = vsub.f32 0.0, %v70
    %v73 = vlaneseq
    %v74 = vshrl.u32 %v73, 7
    %v75 = vadd.s32 %v74, 8
    %v76 = vstv %s40
    %v77 = vadd.s32 %v76, %v74
    %v78 = vadd.s32 %v76, %v75
    %vm79 = vcmp.lt.s32.totalorder %v77, 16
    %vm80 = vcmp.lt.s32.totalorder %v78, 16
    %v81 = vsel %vm79, %v71, 0.0
    %v82 = vsel %vm80, %v72, 0.0
    %vm83 = vcmask 7168
    %v84 = vsel %vm83, %v81, 0.0
    %v85 = vsel %vm83, %v82, 0.0
    %v86 = vadd.f32 %v84, %v85
    %87 = vadd.xlane.f32.xlu0 %v86
    %v88 = vpop.xlane.xlu0 %87
    %v89 = vrot.slane %v88, 4
    %v90 = vadd.f32 %v88, %v89
    %v91 = vrot.slane %v90, 2
    %v92 = vadd.f32 %v90, %v91
    %v93 = vrot.slane %v92, 1
    %v94 = vadd.f32 %v92, %v93
    %s95 = vtos %v94
    %s96 = scalar_lea.smem [#allocation7], 0
    %97 = sst [smem:[%s96]] %s95
    // Predicated region
    $region18: #{cross_entropy_soft_labels.1} parent=1 // pred_check
      _
    $region19: #{cross_entropy_soft_labels.1} parent=1 // pred_check_branch
      %99 = sbr.rel (0) target = $region21
    $region20: #{cross_entropy_soft_labels.1} parent=1 // pred_region
      %s101 = ssub.s32 16, 16
      %102 = vsyncadd [#allocation4], %s101
      %105 = dma.smem_to_hbm [#allocation7], 16, %s2, [#allocation4]
    $region21: #{cross_entropy_soft_labels.1} parent=1 // pred_fallthru
      _
    // Predicated region
    $region22: #{cross_entropy_soft_labels.1} parent=1 // pred_check
      _
    $region23: #{cross_entropy_soft_labels.1} parent=1 // pred_check_branch
      %107 = sbr.rel (0) target = $region25
    $region24: #{cross_entropy_soft_labels.1} parent=1 // pred_region
      %108 = dma.done [#allocation4], 16
    $region25: #{cross_entropy_soft_labels.1} parent=1 // pred_fallthru
      _
    %109 = sfence
    %110 = vsyncpa [#allocation3], 1
    %111 = vsyncpa [#allocation6], 1
    %112 = vsyncpa [#allocation4], 1

</llo_original>
